<compile_context>
chip_gen: v6e
topology: v6e:2x2x1
jax: 0.10.0
libtpu: 0.0.40
codegen_flags: <defaults>
</compile_context>

<pallas_src>
import functools

import jax
import jax.numpy as jnp
from jax.experimental import pallas as pl
from jax.experimental.pallas import tpu as pltpu


def _round_up(x, m):
    return ((x + m - 1) // m) * m


def _conv1x1_relu_kernel(x_ref, w_ref, b_ref, o_ref, *, cout):
    # x_ref: [Cin, TP]        activation tile, NCHW-native
    #                         (channels on sublanes, pixels on lanes)
    # w_ref: [Cout_pad, Cin]  resident weight (constant index_map)
    # b_ref: [Cout_pad, 1]    resident bias
    # o_ref: [cout, TP]       lane-dense output tile
    acc = jnp.dot(w_ref[...], x_ref[...], preferred_element_type=jnp.float32)
    acc = acc + b_ref[...]                     # broadcast over pixel lanes
    o_ref[...] = jnp.maximum(acc[:cout, :], 0.0).astype(o_ref.dtype)


def conv1x1_relu(x_nchw, weight, bias, *, tp_max=2048, use_bf16=False,
                 min_pallas_pixels=512):
    """Fused 1x1 conv + bias + ReLU.

    x_nchw: [N, Cin, H, W]; weight: [Cout, Cin, 1, 1]; bias: [Cout].
    Returns [N, Cout, H, W] (same dtype as x).
    """
    N, Cin, H, W = x_nchw.shape
    Cout = weight.shape[0]
    P = H * W

    w2 = weight.reshape(Cout, Cin)

    # Small problems: Pallas launch + tiling is pure overhead -> plain XLA.
    if N * P < min_pallas_pixels:
        out = (jnp.einsum("oc,ncp->nop", w2, x_nchw.reshape(N, Cin, P))
               + bias.reshape(1, Cout, 1))
        return jnp.maximum(out, 0.0).astype(x_nchw.dtype).reshape(N, Cout, H, W)

    # NCHW-native activation view: [N, Cin, P]. Pure reshape, no copy.
    x3 = x_nchw.reshape(N, Cin, P)

    # Pad only the tiny resident operands: Cout -> multiple of 8 (MXU M dim /
    # sublane alignment). Extra rows are dropped inside the kernel.
    Cout_pad = _round_up(Cout, 8)
    w2p = jnp.pad(w2, ((0, Cout_pad - Cout), (0, 0)))
    b2p = jnp.pad(bias.reshape(Cout, 1), ((0, Cout_pad - Cout), (0, 0)))

    if use_bf16:
        # Memory-bound regime: bf16 operands halve activation DMA bytes and
        # get single-pass MXU issue. Accumulation stays f32.
        x3 = x3.astype(jnp.bfloat16)
        w2p = w2p.astype(jnp.bfloat16)

    # Pixel tile: full extent when it fits (legal even if not 128-aligned),
    # otherwise a 128-aligned tile with an implicit partial last block
    # (out-of-range output lanes are never written back).
    assert tp_max % 128 == 0
    TP = P if P <= tp_max else tp_max
    grid = (N, pl.cdiv(P, TP))

    out_dtype = x_nchw.dtype
    flops = 2 * N * P * Cin * Cout_pad
    bytes_accessed = (x3.size * x3.dtype.itemsize
                      + w2p.size * w2p.dtype.itemsize
                      + b2p.size * b2p.dtype.itemsize
                      + N * Cout * P * jnp.dtype(out_dtype).itemsize)

    out3 = pl.pallas_call(
        functools.partial(_conv1x1_relu_kernel, cout=Cout),
        out_shape=jax.ShapeDtypeStruct((N, Cout, P), out_dtype),
        grid=grid,
        in_specs=[
            pl.BlockSpec((None, Cin, TP), lambda n, p: (n, 0, p)),  # activations
            pl.BlockSpec((Cout_pad, Cin), lambda n, p: (0, 0)),     # resident W
            pl.BlockSpec((Cout_pad, 1), lambda n, p: (0, 0)),       # resident b
        ],
        out_specs=pl.BlockSpec((None, Cout, TP), lambda n, p: (n, 0, p)),
        compiler_params=pltpu.CompilerParams(
            # Batch and pixel axes are pure data-parallel (megacore on v7x).
            dimension_semantics=("parallel", "parallel"),
        ),
        cost_estimate=pl.CostEstimate(
            flops=flops, transcendentals=0, bytes_accessed=bytes_accessed),
    )(x3, w2p, b2p)

    # [N, Cout, P] -> [N, Cout, H, W]: splitting the trailing dim is free.
    return out3.reshape(N, Cout, H, W)


def _reference(x_nchw, weight, bias):
    Cout, Cin = weight.shape[0], weight.shape[1]
    return jnp.maximum(
        jnp.einsum("nchw,oc->nohw", x_nchw, weight.reshape(Cout, Cin))
        + bias.reshape(1, Cout, 1, 1),
        0.0,
    )


if __name__ == "__main__":
    key = jax.random.PRNGKey(0)
    kx, kw, kb, kx2, kx3 = jax.random.split(key, 5)

    Cin, Cout = 440, 110
    weight = jax.random.normal(kw, (Cout, Cin, 1, 1), dtype=jnp.float32) * 0.05
    bias = jax.random.normal(kb, (Cout,), dtype=jnp.float32) * 0.05

    # 1) The module's exact instantiated shape: x258 is [1, 440, 1, 1]
    #    (small-P dispatch: fused XLA op; Pallas launch is pure overhead here).
    x = jax.random.normal(kx, (1, Cin, 1, 1), dtype=jnp.float32)
    out = jax.block_until_ready(conv1x1_relu(x, weight, bias))
    ref = _reference(x, weight, bias)
    assert out.shape == (1, Cout, 1, 1)
    assert jnp.allclose(out, ref, atol=1e-5, rtol=1e-5)

    # 2) Multi-tile Pallas path: N=2, 16x16 spatial, tp_max=128 -> grid (2, 2).
    x_big = jax.random.normal(kx2, (2, Cin, 16, 16), dtype=jnp.float32)
    out_big = jax.block_until_ready(conv1x1_relu(x_big, weight, bias, tp_max=128))
    ref_big = _reference(x_big, weight, bias)
    assert out_big.shape == (2, Cout, 16, 16)
    assert jnp.allclose(out_big, ref_big, atol=1e-4, rtol=1e-4)

    # 3) Non-128-multiple pixel count (P = 24*27 = 648, tp_max=512) ->
    #    exercises the implicit partial last pixel block.
    x_odd = jax.random.normal(kx3, (1, Cin, 24, 27), dtype=jnp.float32)
    out_odd = jax.block_until_ready(conv1x1_relu(x_odd, weight, bias, tp_max=512))
    ref_odd = _reference(x_odd, weight, bias)
    assert out_odd.shape == (1, Cout, 24, 27)
    assert jnp.allclose(out_odd, ref_odd, atol=1e-4, rtol=1e-4)

    # 4) bf16 operand path (f32 accumulation); looser tolerance since the
    #    operands are rounded to bf16.
    out_bf16 = jax.block_until_ready(
        conv1x1_relu(x_big, weight, bias, use_bf16=True))
    assert jnp.allclose(out_bf16, ref_big, atol=5e-2, rtol=5e-2)

    print("KERNEL_OK")
</pallas_src>

<mosaic_0001>
module attributes {stable_mosaic.version = 11 : i64} {
  func.func @_conv1x1_relu_kernel(%arg0: i32, %arg1: i32, %arg2: memref<1x440x128xf32, #tpu.memory_space<vmem>>, %arg3: memref<112x440xf32, #tpu.memory_space<vmem>>, %arg4: memref<112x1xf32, #tpu.memory_space<vmem>>, %arg5: memref<1x110x128xf32, #tpu.memory_space<vmem>>) attributes {dimension_semantics = [#tpu.dimension_semantics<parallel>, #tpu.dimension_semantics<parallel>], iteration_bounds = array<i64: 2, 2>, scalar_prefetch = 0 : i64, scratch_operands = 0 : i64, tpu.core_type = #tpu.core_type<tc>, window_params = [{transform_indices = @transform_0, window_bounds = array<i64: 1, 440, 128>}, {pipeline_mode = #tpu.pipeline_mode<synchronous>, transform_indices = @transform_1, window_bounds = array<i64: 112, 440>}, {pipeline_mode = #tpu.pipeline_mode<synchronous>, transform_indices = @transform_2, window_bounds = array<i64: 112, 1>}, {transform_indices = @transform_3, window_bounds = array<i64: 1, 110, 128>}]} {
    %c0 = arith.constant 0 : index
    %c0_0 = arith.constant 0 : index
    %0 = vector.load %arg3[%c0, %c0_0] : memref<112x440xf32, #tpu.memory_space<vmem>>, vector<112x440xf32>
    %c0_1 = arith.constant 0 : index
    %c0_2 = arith.constant 0 : index
    %c0_3 = arith.constant 0 : index
    %1 = vector.load %arg2[%c0_1, %c0_2, %c0_3] : memref<1x440x128xf32, #tpu.memory_space<vmem>>, vector<1x440x128xf32>
    %2 = vector.shape_cast %1 : vector<1x440x128xf32> to vector<440x128xf32>
    %cst = arith.constant dense<0.000000e+00> : vector<112x128xf32>
    %3 = tpu.matmul %0, %2, %cst {dimension_numbers = #tpu.dot_dimension_numbers<[1], [0], [0], [1], [0, 0, 1, 1], [], []>} : vector<112x440xf32>, vector<440x128xf32>, vector<112x128xf32> -> vector<112x128xf32>
    %c0_4 = arith.constant 0 : index
    %c0_5 = arith.constant 0 : index
    %4 = vector.load %arg4[%c0_4, %c0_5] : memref<112x1xf32, #tpu.memory_space<vmem>>, vector<112x1xf32>
    %5 = vector.broadcast %4 : vector<112x1xf32> to vector<112x128xf32>
    %6 = arith.addf %3, %5 : vector<112x128xf32>
    %7 = vector.extract_strided_slice %6 {offsets = [0, 0], sizes = [110, 128], strides = [1, 1]} : vector<112x128xf32> to vector<110x128xf32>
    %cst_6 = arith.constant 0.000000e+00 : f32
    %8 = vector.broadcast %cst_6 : f32 to vector<110x128xf32>
    %9 = arith.maximumf %7, %8 : vector<110x128xf32>
    %c0_7 = arith.constant 0 : index
    %c0_8 = arith.constant 0 : index
    %c0_9 = arith.constant 0 : index
    %10 = vector.load %arg5[%c0_7, %c0_8, %c0_9] : memref<1x110x128xf32, #tpu.memory_space<vmem>>, vector<1x110x128xf32>
    %11 = vector.shape_cast %10 : vector<1x110x128xf32> to vector<110x128xf32>
    %12 = vector.shape_cast %9 : vector<110x128xf32> to vector<1x110x128xf32>
    tpu.vector_store %arg5[%c0_7, %c0_8, %c0_9], %12 {strides = array<i32>} : memref<1x110x128xf32, #tpu.memory_space<vmem>>, vector<1x110x128xf32>,
    return
  }
  func.func @transform_0(%arg0: i32, %arg1: i32) -> (i32, i32, i32) {
    %c0_i32 = arith.constant 0 : i32
    %c0_i32_0 = arith.constant 0 : i32
    return %arg0, %c0_i32, %arg1 : i32, i32, i32
  }
  func.func @transform_1(%arg0: i32, %arg1: i32) -> (i32, i32) {
    %c0_i32 = arith.constant 0 : i32
    %c0_i32_0 = arith.constant 0 : i32
    %c0_i32_1 = arith.constant 0 : i32
    return %c0_i32, %c0_i32_0 : i32, i32
  }
  func.func @transform_2(%arg0: i32, %arg1: i32) -> (i32, i32) {
    %c0_i32 = arith.constant 0 : i32
    %c0_i32_0 = arith.constant 0 : i32
    %c0_i32_1 = arith.constant 0 : i32
    return %c0_i32, %c0_i32_0 : i32, i32
  }
  func.func @transform_3(%arg0: i32, %arg1: i32) -> (i32, i32, i32) {
    %c0_i32 = arith.constant 0 : i32
    %c0_i32_0 = arith.constant 0 : i32
    return %arg0, %c0_i32, %arg1 : i32, i32, i32
  }
}

</mosaic_0001>

<llo_original>
// kernel: tpu_custom_call.1
$region0: #{tpu_custom_call.1}
  #allocation0 [shape = 'u32[]', space=smem, size = 0x4, offset = 0x4, fixed_abs, tag = 'smem constant byte address 0x4 - core index']
  #allocation1 [shape = 'u32[144,128]{1,0:T(1,128)}', space=vmem, size = 0x12000, scoped, tag = 'internal scratch']
  %s0 = inlined_call_operand.hbm [shape: f32[2,440,256], index: 0, kind: input, shape index: {}]
  %s1 = inlined_call_operand.vmem [shape: f32[112,440], index: 1, kind: input, shape index: {}]
  %s2 = inlined_call_operand.vmem [shape: f32[112,1], index: 2, kind: input, shape index: {}]
  %s3 = inlined_call_operand.vmem [shape: f32[2,110,256], index: 3, kind: output, shape index: {}]
  %s4 = sld [smem:[#allocation0]]
  $region83: #{tpu_custom_call.1} parent=0
    _
  %s6 = ssub.s32 1, %s4
  %s7 = scalar_select 0, %s6, %s4
  $region1: #{tpu_custom_call.1} parent=0
    #allocation2 [shape = 'u8[450560]{0}', space=vmem, size = 0x6e000, scoped, tag = 'input window, operand 0']
    #allocation3 [shape = 's32[2]{0}', space=sflag, size = 0x8, scoped, tag = 'scoped memory for tpu_custom_call.1']
    #allocation4 [shape = 'u8[114688]{0}', space=vmem, size = 0x1c000, scoped, tag = 'output window, operand 0']
    %8 = vsyncpa [#allocation3], 0
    %s9 = scalar_lea.sflag [#allocation3], 1
    %10 = vsyncpa %s9, 0
    loop: start=0, step=1, limit=6
    $region2: #{tpu_custom_call.1} parent=1 // loop_pre_header
      _
    $region3: #{tpu_custom_call.1} parent=1 // loop_header
      %s12 = sphi 0, %s16
      %p13 = scmp.ge.s32.totalorder %s12, 6
      %s19 = sphi 0, %s31
      %s20 = sphi 0, %s27
      %s21 = sphi 0, %s19
      %s22 = sphi 0, %s20
      %s23 = sphi 0, %s21
      %s24 = sphi 0, %s22
      %s36 = sphi 0, %s38
      %s39 = sphi 0, %s36
      %s40 = sphi 0, %s39
      %s56 = sphi 0, %s40
      %s60 = sphi 0, %s60
      %s62 = sphi 0, %s60
      %s63 = sphi 0, %s62
      %s77 = sphi 0, %s63
      %s81 = sphi 0, %s81
      %s83 = sphi 0, %s81
      %s84 = sphi 0, %s83
      %s98 = sphi 0, %s84
      %s106 = sphi 0, %s108
      %s109 = sphi 0, %s106
      %s110 = sphi 0, %s109
      %s126 = sphi 0, %s110
    $region4: #{tpu_custom_call.1} parent=1 // loop_header_branch
      %15 = sbr.rel (%p13) target = $region8
    $region5: #{tpu_custom_call.1} parent=1 // loop_body
      %s17 = ssub.s32 %s12, 1
      %s18 = ssub.s32 %s12, 2
      %s25 = sadd.s32 1, %s20
      %p26 = scmp.ge.s32.totalorder %s25, 2
      %s27 = scalar_select %p26, 0, %s25
      %s28 = sadd.s32 1, %s19
      %s29 = scalar_select %p26, %s28, %s19
      %p30 = scmp.ge.s32.totalorder %s29, 2
      %s31 = scalar_select %p30, 0, %s29
      %s32 = ssub.s32 %s19, %s31
      %s33 = ssub.s32 %s20, %s27
      %s34 = sor.u32 %s32, %s33
      %p35 = scmp.eq.s32.totalorder %s34, 0
      %s37 = sadd.s32 %s36, 1
      %s38 = scalar_select %p35, %s36, %s37
      %p41 = pneg %p35
      %p42 = scmp.eq.s32.totalorder %s12, 3
      %p43 = por %p41, %p42
      %p44 = scmp.ne.s32.totalorder %s36, %s39
      %p45 = scmp.eq.s32.totalorder %s12, 0
      %p46 = por %p44, %p45
      %p47 = scmp.ne.s32.totalorder %s36, %s39
      %p48 = scmp.eq.s32.totalorder %s17, 3
      %p49 = por %p47, %p48
      %p50 = scmp.ne.s32.totalorder %s39, %s40
      %p51 = scmp.eq.s32.totalorder %s17, 0
      %p52 = por %p50, %p51
      %p53 = scmp.ne.s32.totalorder %s39, %s40
      %p54 = scmp.eq.s32.totalorder %s18, 3
      %p55 = por %p53, %p54
      %p57 = scmp.ne.s32.totalorder %s40, %s56
      %p58 = scmp.eq.s32.totalorder %s18, 0
      %p59 = por %p57, %p58
      %s61 = sadd.s32 %s60, 1
      %p64 = scmp.eq.s32.totalorder %s12, 3
      %p65 = scmp.ne.s32.totalorder %s60, %s62
      %p66 = scmp.eq.s32.totalorder %s12, 0
      %p67 = por %p65, %p66
      %p68 = scmp.ne.s32.totalorder %s60, %s62
      %p69 = scmp.eq.s32.totalorder %s17, 3
      %p70 = por %p68, %p69
      %p71 = scmp.ne.s32.totalorder %s62, %s63
      %p72 = scmp.eq.s32.totalorder %s17, 0
      %p73 = por %p71, %p72
      %p74 = scmp.ne.s32.totalorder %s62, %s63
      %p75 = scmp.eq.s32.totalorder %s18, 3
      %p76 = por %p74, %p75
      %p78 = scmp.ne.s32.totalorder %s63, %s77
      %p79 = scmp.eq.s32.totalorder %s18, 0
      %p80 = por %p78, %p79
      %s82 = sadd.s32 %s81, 1
      %p85 = scmp.eq.s32.totalorder %s12, 3
      %p86 = scmp.ne.s32.totalorder %s81, %s83
      %p87 = scmp.eq.s32.totalorder %s12, 0
      %p88 = por %p86, %p87
      %p89 = scmp.ne.s32.totalorder %s81, %s83
      %p90 = scmp.eq.s32.totalorder %s17, 3
      %p91 = por %p89, %p90
      %p92 = scmp.ne.s32.totalorder %s83, %s84
      %p93 = scmp.eq.s32.totalorder %s17, 0
      %p94 = por %p92, %p93
      %p95 = scmp.ne.s32.totalorder %s83, %s84
      %p96 = scmp.eq.s32.totalorder %s18, 3
      %p97 = por %p95, %p96
      %p99 = scmp.ne.s32.totalorder %s84, %s98
      %p100 = scmp.eq.s32.totalorder %s18, 0
      %p101 = por %p99, %p100
      %s102 = ssub.s32 %s19, %s31
      %s103 = ssub.s32 %s20, %s27
      %s104 = sor.u32 %s102, %s103
      %p105 = scmp.eq.s32.totalorder %s104, 0
      %s107 = sadd.s32 %s106, 1
      %s108 = scalar_select %p105, %s106, %s107
      %p111 = pneg %p105
      %p112 = scmp.eq.s32.totalorder %s12, 3
      %p113 = por %p111, %p112
      %p114 = scmp.ne.s32.totalorder %s106, %s109
      %p115 = scmp.eq.s32.totalorder %s12, 0
      %p116 = por %p114, %p115
      %p117 = scmp.ne.s32.totalorder %s106, %s109
      %p118 = scmp.eq.s32.totalorder %s17, 3
      %p119 = por %p117, %p118
      %p120 = scmp.ne.s32.totalorder %s109, %s110
      %p121 = scmp.eq.s32.totalorder %s17, 0
      %p122 = por %p120, %p121
      %p123 = scmp.ne.s32.totalorder %s109, %s110
      %p124 = scmp.eq.s32.totalorder %s18, 3
      %p125 = por %p123, %p124
      %p127 = scmp.ne.s32.totalorder %s110, %s126
      %p128 = scmp.eq.s32.totalorder %s18, 0
      %p129 = por %p127, %p128
      %p130 = scmp.le.s32.totalorder 1, %s12
      %p131 = scmp.lt.s32.totalorder %s12, 5
      %p132 = pnand %p130, %p131
      %p133 = pneg %p132
      // Predicated region
      $region9: #{tpu_custom_call.1} parent=5 // pred_check
        _
      $region10: #{tpu_custom_call.1} parent=5 // pred_check_branch
        %135 = sbr.rel (%p132) target = $region12
      $region11: #{tpu_custom_call.1} parent=5 // pred_region
        %s136 = ssub.s32 %s12, 1
        // Predicated region
        $region13: #{tpu_custom_call.1} parent=11 // pred_check
          %p137 = pneg %p73
        $region14: #{tpu_custom_call.1} parent=11 // pred_check_branch
          %139 = sbr.rel (%p137) target = $region16
        $region15: #{tpu_custom_call.1} parent=11 // pred_region
          _
        $region16: #{tpu_custom_call.1} parent=11 // pred_fallthru
          _
        // Predicated region
        $region17: #{tpu_custom_call.1} parent=11 // pred_check
          %p140 = pneg %p94
        $region18: #{tpu_custom_call.1} parent=11 // pred_check_branch
          %142 = sbr.rel (%p140) target = $region20
        $region19: #{tpu_custom_call.1} parent=11 // pred_region
          _
        $region20: #{tpu_custom_call.1} parent=11 // pred_fallthru
          _
      $region12: #{tpu_custom_call.1} parent=5 // pred_fallthru
        _
      %p143 = scmp.lt.s32.totalorder %s12, 4
      // Predicated region
      $region21: #{tpu_custom_call.1} parent=5 // pred_check
        %p144 = pneg %p143
      $region22: #{tpu_custom_call.1} parent=5 // pred_check_branch
        %146 = sbr.rel (%p144) target = $region24
      $region23: #{tpu_custom_call.1} parent=5 // pred_region
        // Predicated region
        $region25: #{tpu_custom_call.1} parent=23 // pred_check
          %p147 = pneg %p46
        $region26: #{tpu_custom_call.1} parent=23 // pred_check_branch
          %149 = sbr.rel (%p147) target = $region28
        $region27: #{tpu_custom_call.1} parent=23 // pred_region
          %s150 = sand.u32 %s36, 1
          %s151 = scalar_lea.sflag [#allocation3], %s150
          %s152 = sand.u32 %s36, 1
          %s153 = smul.addr %s152, 440
          %s154 = scalar_lea.vmem [#allocation2], %s153
          %s156 = ssub.s32 7040, 7040
          %157 = vsyncadd %s151, %s156
          %s158 = smul.addr %s19, 110
          %s159 = sadd.s32 %s20, %s158
          %s160 = smul.addr %s159, 128
          %s161 = scalar_lea.hbm %s0, %s160
          %s162 = sshll.u32 %s154, 4
          %s163 = int_to_ptr.vmem [resolvable:$true] %s162
          %168 = dma.hbm_to_vmem [thread:$0]  %s161, 7040, %s163, %s151, 256, 128, 8
        $region28: #{tpu_custom_call.1} parent=23 // pred_fallthru
          _
      $region24: #{tpu_custom_call.1} parent=5 // pred_fallthru
        _
      %p169 = scmp.le.s32.totalorder 1, %s12
      %p170 = scmp.lt.s32.totalorder %s12, 5
      %p171 = pnand %p169, %p170
      %p172 = pneg %p171
      // Predicated region
      $region29: #{tpu_custom_call.1} parent=5 // pred_check
        _
      $region30: #{tpu_custom_call.1} parent=5 // pred_check_branch
        %174 = sbr.rel (%p171) target = $region32
      $region31: #{tpu_custom_call.1} parent=5 // pred_region
        %s175 = ssub.s32 %s12, 1
        %s176 = sand.u32 %s39, 1
        %s177 = scalar_lea.sflag [#allocation3], %s176
        %s178 = sand.u32 %s39, 1
        %s179 = smul.addr %s178, 440
        %s180 = scalar_lea.vmem [#allocation2], %s179
        // Predicated region
        $region33: #{tpu_custom_call.1} parent=31 // pred_check
          %p181 = pneg %p52
        $region34: #{tpu_custom_call.1} parent=31 // pred_check_branch
          %183 = sbr.rel (%p181) target = $region36
        $region35: #{tpu_custom_call.1} parent=31 // pred_region
          %184 = dma.done %s177, 7040
        $region36: #{tpu_custom_call.1} parent=31 // pred_fallthru
          _
        %s185 = sand.u32 %s39, 1
        %s186 = scalar_lea.sflag [#allocation3], %s185
        %s187 = sand.u32 %s39, 1
        %s188 = smul.addr %s187, 440
        %s189 = scalar_lea.vmem [#allocation2], %s188
        %p190 = pneg %p52
        %p191 = pneg %p49
        %p192 = pneg %p73
        %p193 = pneg %p70
        %p194 = pneg %p94
        %p195 = pneg %p91
        %p196 = pneg %p122
        %p197 = pneg %p119
        %s198 = sand.u32 %s109, 1
        %s199 = sand.u32 %s109, 1
        %s200 = smul.addr %s199, 112
        %s201 = scalar_lea.vmem [#allocation4], %s200
        %v202 = vld [vmem:[%s1] sm:$0xff]
        %v203 = vld [vmem:[%s1 + $0x8] sm:$0xff]
        %v204 = vld [vmem:[%s1 + $0x10] sm:$0xff]
        %v205 = vld [vmem:[%s1 + $0x18] sm:$0xff]
        %v206 = vld [vmem:[%s1 + $0x20] sm:$0xff]
        %v207 = vld [vmem:[%s1 + $0x28] sm:$0xff]
        %v208 = vld [vmem:[%s1 + $0x30] sm:$0xff]
        %v209 = vld [vmem:[%s1 + $0x38] sm:$0xff]
        %v210 = vld [vmem:[%s1 + $0x40] sm:$0xff]
        %v211 = vld [vmem:[%s1 + $0x48] sm:$0xff]
        %v212 = vld [vmem:[%s1 + $0x50] sm:$0xff]
        %v213 = vld [vmem:[%s1 + $0x58] sm:$0xff]
        %v214 = vld [vmem:[%s1 + $0x60] sm:$0xff]
        %v215 = vld [vmem:[%s1 + $0x68] sm:$0xff]
        %v216 = vld [vmem:[%s1 + $0x70] sm:$0xff]
        %v217 = vld [vmem:[%s1 + $0x78] sm:$0xff]
        %v218 = vld [vmem:[%s1 + $0x80] sm:$0xff]
        %v219 = vld [vmem:[%s1 + $0x88] sm:$0xff]
        %v220 = vld [vmem:[%s1 + $0x90] sm:$0xff]
        %v221 = vld [vmem:[%s1 + $0x98] sm:$0xff]
        %v222 = vld [vmem:[%s1 + $0xa0] sm:$0xff]
        %v223 = vld [vmem:[%s1 + $0xa8] sm:$0xff]
        %v224 = vld [vmem:[%s1 + $0xb0] sm:$0xff]
        %v225 = vld [vmem:[%s1 + $0xb8] sm:$0xff]
        %v226 = vld [vmem:[%s1 + $0xc0] sm:$0xff]
        %v227 = vld [vmem:[%s1 + $0xc8] sm:$0xff]
        %v228 = vld [vmem:[%s1 + $0xd0] sm:$0xff]
        %v229 = vld [vmem:[%s1 + $0xd8] sm:$0xff]
        %v230 = vld [vmem:[%s1 + $0xe0] sm:$0xff]
        %v231 = vld [vmem:[%s1 + $0xe8] sm:$0xff]
        %v232 = vld [vmem:[%s1 + $0xf0] sm:$0xff]
        %v233 = vld [vmem:[%s1 + $0xf8] sm:$0xff]
        %v234 = vld [vmem:[%s1 + $0x100] sm:$0xff]
        %v235 = vld [vmem:[%s1 + $0x108] sm:$0xff]
        %v236 = vld [vmem:[%s1 + $0x110] sm:$0xff]
        %v237 = vld [vmem:[%s1 + $0x118] sm:$0xff]
        %v238 = vld [vmem:[%s1 + $0x120] sm:$0xff]
        %v239 = vld [vmem:[%s1 + $0x128] sm:$0xff]
        %v240 = vld [vmem:[%s1 + $0x130] sm:$0xff]
        %v241 = vld [vmem:[%s1 + $0x138] sm:$0xff]
        %v242 = vld [vmem:[%s1 + $0x140] sm:$0xff]
        %v243 = vld [vmem:[%s1 + $0x148] sm:$0xff]
        %v244 = vld [vmem:[%s1 + $0x150] sm:$0xff]
        %v245 = vld [vmem:[%s1 + $0x158] sm:$0xff]
        %v246 = vld [vmem:[%s1 + $0x160] sm:$0xff]
        %v247 = vld [vmem:[%s1 + $0x168] sm:$0xff]
        %v248 = vld [vmem:[%s1 + $0x170] sm:$0xff]
        %v249 = vld [vmem:[%s1 + $0x178] sm:$0xff]
        %v250 = vld [vmem:[%s1 + $0x180] sm:$0xff]
        %v251 = vld [vmem:[%s1 + $0x188] sm:$0xff]
        %v252 = vld [vmem:[%s1 + $0x190] sm:$0xff]
        %v253 = vld [vmem:[%s1 + $0x198] sm:$0xff]
        %v254 = vld [vmem:[%s1 + $0x1a0] sm:$0xff]
        %v255 = vld [vmem:[%s1 + $0x1a8] sm:$0xff]
        %v256 = vld [vmem:[%s1 + $0x1b0] sm:$0xff]
        %v257 = vld [vmem:[%s1 + $0x1b8] sm:$0xff]
        %v258 = vld [vmem:[%s180] sm:$0xff]
        %v259 = vld [vmem:[%s180 + $0x8] sm:$0xff]
        %v260 = vld [vmem:[%s180 + $0x10] sm:$0xff]
        %v261 = vld [vmem:[%s180 + $0x18] sm:$0xff]
        %v262 = vld [vmem:[%s180 + $0x20] sm:$0xff]
        %v263 = vld [vmem:[%s180 + $0x28] sm:$0xff]
        %v264 = vld [vmem:[%s180 + $0x30] sm:$0xff]
        %v265 = vld [vmem:[%s180 + $0x38] sm:$0xff]
        %v266 = vld [vmem:[%s180 + $0x40] sm:$0xff]
        %v267 = vld [vmem:[%s180 + $0x48] sm:$0xff]
        %v268 = vld [vmem:[%s180 + $0x50] sm:$0xff]
        %v269 = vld [vmem:[%s180 + $0x58] sm:$0xff]
        %v270 = vld [vmem:[%s180 + $0x60] sm:$0xff]
        %v271 = vld [vmem:[%s180 + $0x68] sm:$0xff]
        %v272 = vld [vmem:[%s180 + $0x70] sm:$0xff]
        %v273 = vld [vmem:[%s180 + $0x78] sm:$0xff]
        %v274 = vld [vmem:[%s180 + $0x80] sm:$0xff]
        %v275 = vld [vmem:[%s180 + $0x88] sm:$0xff]
        %v276 = vld [vmem:[%s180 + $0x90] sm:$0xff]
        %v277 = vld [vmem:[%s180 + $0x98] sm:$0xff]
        %v278 = vld [vmem:[%s180 + $0xa0] sm:$0xff]
        %v279 = vld [vmem:[%s180 + $0xa8] sm:$0xff]
        %v280 = vld [vmem:[%s180 + $0xb0] sm:$0xff]
        %v281 = vld [vmem:[%s180 + $0xb8] sm:$0xff]
        %v282 = vld [vmem:[%s180 + $0xc0] sm:$0xff]
        %v283 = vld [vmem:[%s180 + $0xc8] sm:$0xff]
        %v284 = vld [vmem:[%s180 + $0xd0] sm:$0xff]
        %v285 = vld [vmem:[%s180 + $0xd8] sm:$0xff]
        %v286 = vld [vmem:[%s180 + $0xe0] sm:$0xff]
        %v287 = vld [vmem:[%s180 + $0xe8] sm:$0xff]
        %v288 = vld [vmem:[%s180 + $0xf0] sm:$0xff]
        %v289 = vld [vmem:[%s180 + $0xf8] sm:$0xff]
        %v290 = vld [vmem:[%s180 + $0x100] sm:$0xff]
        %v291 = vld [vmem:[%s180 + $0x108] sm:$0xff]
        %v292 = vld [vmem:[%s180 + $0x110] sm:$0xff]
        %v293 = vld [vmem:[%s180 + $0x118] sm:$0xff]
        %v294 = vld [vmem:[%s180 + $0x120] sm:$0xff]
        %v295 = vld [vmem:[%s180 + $0x128] sm:$0xff]
        %v296 = vld [vmem:[%s180 + $0x130] sm:$0xff]
        %v297 = vld [vmem:[%s180 + $0x138] sm:$0xff]
        %v298 = vld [vmem:[%s180 + $0x140] sm:$0xff]
        %v299 = vld [vmem:[%s180 + $0x148] sm:$0xff]
        %v300 = vld [vmem:[%s180 + $0x150] sm:$0xff]
        %v301 = vld [vmem:[%s180 + $0x158] sm:$0xff]
        %v302 = vld [vmem:[%s180 + $0x160] sm:$0xff]
        %v303 = vld [vmem:[%s180 + $0x168] sm:$0xff]
        %v304 = vld [vmem:[%s180 + $0x170] sm:$0xff]
        %v305 = vld [vmem:[%s180 + $0x178] sm:$0xff]
        %v306 = vld [vmem:[%s180 + $0x180] sm:$0xff]
        %v307 = vld [vmem:[%s180 + $0x188] sm:$0xff]
        %v308 = vld [vmem:[%s180 + $0x190] sm:$0xff]
        %v309 = vld [vmem:[%s180 + $0x198] sm:$0xff]
        %v310 = vld [vmem:[%s180 + $0x1a0] sm:$0xff]
        %v311 = vld [vmem:[%s180 + $0x1a8] sm:$0xff]
        %v312 = vld [vmem:[%s180 + $0x1b0] sm:$0xff]
        %v313 = vld [vmem:[%s2] sm:$0xff]
        %v314 = vld [vmem:[%s2 + $0x8] sm:$0xff]
        %v315 = vld [vmem:[%s2 + $0x10] sm:$0xff]
        %v316 = vld [vmem:[%s2 + $0x18] sm:$0xff]
        %v317 = vld [vmem:[%s2 + $0x20] sm:$0xff]
        %v318 = vld [vmem:[%s2 + $0x28] sm:$0xff]
        %v319 = vld [vmem:[%s2 + $0x30] sm:$0xff]
        %v320 = vld [vmem:[%s2 + $0x38] sm:$0xff]
        %v321 = vld [vmem:[%s2 + $0x40] sm:$0xff]
        %v322 = vld [vmem:[%s2 + $0x48] sm:$0xff]
        %v323 = vld [vmem:[%s2 + $0x50] sm:$0xff]
        %v324 = vld [vmem:[%s2 + $0x58] sm:$0xff]
        %v325 = vld [vmem:[%s2 + $0x60] sm:$0xff]
        %v326 = vld [vmem:[%s2 + $0x68] sm:$0xff]
        %328 = vset.pattern.permute.xlu0 0
        %329 = vperm.xlu0 %328, %v313
        %v330 = vpop.permute.xlu0 %329
        %333 = vset.pattern.permute.xlu0 0
        %334 = vperm.xlu0 %333, %v314
        %v335 = vpop.permute.xlu0 %334
        %338 = vset.pattern.permute.xlu0 0
        %339 = vperm.xlu0 %338, %v315
        %v340 = vpop.permute.xlu0 %339
        %343 = vset.pattern.permute.xlu0 0
        %344 = vperm.xlu0 %343, %v316
        %v345 = vpop.permute.xlu0 %344
        %348 = vset.pattern.permute.xlu0 0
        %349 = vperm.xlu0 %348, %v317
        %v350 = vpop.permute.xlu0 %349
        %353 = vset.pattern.permute.xlu0 0
        %354 = vperm.xlu0 %353, %v318
        %v355 = vpop.permute.xlu0 %354
        %358 = vset.pattern.permute.xlu0 0
        %359 = vperm.xlu0 %358, %v319
        %v360 = vpop.permute.xlu0 %359
        %363 = vset.pattern.permute.xlu0 0
        %364 = vperm.xlu0 %363, %v320
        %v365 = vpop.permute.xlu0 %364
        %368 = vset.pattern.permute.xlu0 0
        %369 = vperm.xlu0 %368, %v321
        %v370 = vpop.permute.xlu0 %369
        %373 = vset.pattern.permute.xlu0 0
        %374 = vperm.xlu0 %373, %v322
        %v375 = vpop.permute.xlu0 %374
        %378 = vset.pattern.permute.xlu0 0
        %379 = vperm.xlu0 %378, %v323
        %v380 = vpop.permute.xlu0 %379
        %383 = vset.pattern.permute.xlu0 0
        %384 = vperm.xlu0 %383, %v324
        %v385 = vpop.permute.xlu0 %384
        %388 = vset.pattern.permute.xlu0 0
        %389 = vperm.xlu0 %388, %v325
        %v390 = vpop.permute.xlu0 %389
        %393 = vset.pattern.permute.xlu0 0
        %394 = vperm.xlu0 %393, %v326
        %v395 = vpop.permute.xlu0 %394
        %vm397 = vcmask 457728
        %v399 = vsel %vm397, %v205, 0
        %v402 = vsel %vm397, %v209, 0
        %v405 = vsel %vm397, %v213, 0
        %v408 = vsel %vm397, %v217, 0
        %v411 = vsel %vm397, %v221, 0
        %v414 = vsel %vm397, %v225, 0
        %v417 = vsel %vm397, %v229, 0
        %v420 = vsel %vm397, %v233, 0
        %v423 = vsel %vm397, %v237, 0
        %v426 = vsel %vm397, %v241, 0
        %v429 = vsel %vm397, %v245, 0
        %v432 = vsel %vm397, %v249, 0
        %v435 = vsel %vm397, %v253, 0
        %v438 = vsel %vm397, %v257, 0
        %440 = vmatprep.subr.mxu0 0.0
        %441 = vmatpush1.msra.mxu0 %v273
        %442 = vmatprep.subr.mxu0 0.0
        %443 = vmatpush1.msra.mxu0 %v272
        %444 = vmatprep.subr.mxu0 0.0
        %445 = vmatpush1.msra.mxu0 %v271
        %446 = vmatprep.subr.mxu0 0.0
        %447 = vmatpush1.msra.mxu0 %v270
        %448 = vmatprep.subr.mxu0 0.0
        %449 = vmatpush1.msra.mxu0 %v269
        %450 = vmatprep.subr.mxu0 0.0
        %451 = vmatpush1.msra.mxu0 %v268
        %452 = vmatprep.subr.mxu0 0.0
        %453 = vmatpush1.msra.mxu0 %v267
        %454 = vmatprep.subr.mxu0 0.0
        %455 = vmatpush1.msra.mxu0 %v266
        %456 = vmatprep.subr.mxu0 0.0
        %457 = vmatpush1.msra.mxu0 %v265
        %458 = vmatprep.subr.mxu0 0.0
        %459 = vmatpush1.msra.mxu0 %v264
        %460 = vmatprep.subr.mxu0 0.0
        %461 = vmatpush1.msra.mxu0 %v263
        %462 = vmatprep.subr.mxu0 0.0
        %463 = vmatpush1.msra.mxu0 %v262
        %464 = vmatprep.subr.mxu0 0.0
        %465 = vmatpush1.msra.mxu0 %v261
        %466 = vmatprep.subr.mxu0 0.0
        %467 = vmatpush1.msra.mxu0 %v260
        %468 = vmatprep.subr.mxu0 0.0
        %469 = vmatpush1.msra.mxu0 %v259
        %470 = vmatprep.subr.mxu0 0.0
        %471 = vmatpush1.msra.mxu0 %v258
        %472 = vmatprep.subr.mxu0 0.0
        %473 = vmatpush2.msra.mxu0 %v289
        %474 = vmatprep.subr.mxu0 0.0
        %475 = vmatpush2.msra.mxu0 %v288
        %476 = vmatprep.subr.mxu0 0.0
        %477 = vmatpush2.msra.mxu0 %v287
        %478 = vmatprep.subr.mxu0 0.0
        %479 = vmatpush2.msra.mxu0 %v286
        %480 = vmatprep.subr.mxu0 0.0
        %481 = vmatpush2.msra.mxu0 %v285
        %482 = vmatprep.subr.mxu0 0.0
        %483 = vmatpush2.msra.mxu0 %v284
        %484 = vmatprep.subr.mxu0 0.0
        %485 = vmatpush2.msra.mxu0 %v283
        %486 = vmatprep.subr.mxu0 0.0
        %487 = vmatpush2.msra.mxu0 %v282
        %488 = vmatprep.subr.mxu0 0.0
        %489 = vmatpush2.msra.mxu0 %v281
        %490 = vmatprep.subr.mxu0 0.0
        %491 = vmatpush2.msra.mxu0 %v280
        %492 = vmatprep.subr.mxu0 0.0
        %493 = vmatpush2.msra.mxu0 %v279
        %494 = vmatprep.subr.mxu0 0.0
        %495 = vmatpush2.msra.mxu0 %v278
        %496 = vmatprep.subr.mxu0 0.0
        %497 = vmatpush2.msra.mxu0 %v277
        %498 = vmatprep.subr.mxu0 0.0
        %499 = vmatpush2.msra.mxu0 %v276
        %500 = vmatprep.subr.mxu0 0.0
        %501 = vmatpush2.msra.mxu0 %v275
        %502 = vmatprep.subr.mxu0 0.0
        %503 = vmatpush2.msra.mxu0 %v274
        %504 = vmatprep.mubr.f32.mxu0 %v203
        %505 = vmatmul.mubr.f32.gmra.mxu0 %v202
        %v506 = vpop.f32.mrf.mxu0
        %v507 = vadd.f32 %v330, %v506
        %v508 = vpop.f32.mrf.mxu0
        %509 = vmatprep.mubr.f32.mxu0 %v207
        %510 = vmatmul.mubr.f32.gmra.mxu0 %v206
        %v511 = vpop.f32.mrf.mxu0
        %v512 = vadd.f32 %v335, %v511
        %v513 = vpop.f32.mrf.mxu0
        %514 = vmatprep.mubr.f32.mxu0 %v211
        %515 = vmatmul.mubr.f32.gmra.mxu0 %v210
        %v516 = vpop.f32.mrf.mxu0
        %v517 = vadd.f32 %v340, %v516
        %v518 = vpop.f32.mrf.mxu0
        %519 = vmatprep.mubr.f32.mxu0 %v215
        %520 = vmatmul.mubr.f32.gmra.mxu0 %v214
        %v521 = vpop.f32.mrf.mxu0
        %v522 = vadd.f32 %v345, %v521
        %v523 = vpop.f32.mrf.mxu0
        %524 = vmatprep.mubr.f32.mxu0 %v219
        %525 = vmatmul.mubr.f32.gmra.mxu0 %v218
        %v526 = vpop.f32.mrf.mxu0
        %v527 = vadd.f32 %v350, %v526
        %v528 = vpop.f32.mrf.mxu0
        %529 = vmatprep.mubr.f32.mxu0 %v223
        %530 = vmatmul.mubr.f32.gmra.mxu0 %v222
        %v531 = vpop.f32.mrf.mxu0
        %v532 = vadd.f32 %v355, %v531
        %v533 = vpop.f32.mrf.mxu0
        %534 = vmatprep.mubr.f32.mxu0 %v227
        %535 = vmatmul.mubr.f32.gmra.mxu0 %v226
        %v536 = vpop.f32.mrf.mxu0
        %v537 = vadd.f32 %v360, %v536
        %v538 = vpop.f32.mrf.mxu0
        %539 = vmatprep.mubr.f32.mxu0 %v231
        %540 = vmatmul.mubr.f32.gmra.mxu0 %v230
        %v541 = vpop.f32.mrf.mxu0
        %v542 = vadd.f32 %v365, %v541
        %v543 = vpop.f32.mrf.mxu0
        %544 = vmatprep.mubr.f32.mxu0 %v235
        %545 = vmatmul.mubr.f32.gmra.mxu0 %v234
        %v546 = vpop.f32.mrf.mxu0
        %v547 = vadd.f32 %v370, %v546
        %v548 = vpop.f32.mrf.mxu0
        %549 = vmatprep.mubr.f32.mxu0 %v239
        %550 = vmatmul.mubr.f32.gmra.mxu0 %v238
        %v551 = vpop.f32.mrf.mxu0
        %v552 = vadd.f32 %v375, %v551
        %v553 = vpop.f32.mrf.mxu0
        %554 = vmatprep.mubr.f32.mxu0 %v243
        %555 = vmatmul.mubr.f32.gmra.mxu0 %v242
        %v556 = vpop.f32.mrf.mxu0
        %v557 = vadd.f32 %v380, %v556
        %v558 = vpop.f32.mrf.mxu0
        %559 = vmatprep.mubr.f32.mxu0 %v247
        %560 = vmatmul.mubr.f32.gmra.mxu0 %v246
        %v561 = vpop.f32.mrf.mxu0
        %v562 = vadd.f32 %v385, %v561
        %v563 = vpop.f32.mrf.mxu0
        %564 = vmatprep.mubr.f32.mxu0 %v251
        %565 = vmatmul.mubr.f32.gmra.mxu0 %v250
        %v566 = vpop.f32.mrf.mxu0
        %v567 = vadd.f32 %v390, %v566
        %v568 = vpop.f32.mrf.mxu0
        %569 = vmatprep.mubr.f32.mxu0 %v255
        %570 = vmatmul.mubr.f32.gmra.mxu0 %v254
        %v571 = vpop.f32.mrf.mxu0
        %v572 = vadd.f32 %v395, %v571
        %v573 = vpop.f32.mrf.mxu0
        %574 = vdwg.mxu0
        %575 = vmatprep.subr.mxu0 0.0
        %576 = vmatpush1.msra.mxu0 %v305
        %577 = vmatprep.subr.mxu0 0.0
        %578 = vmatpush1.msra.mxu0 %v304
        %579 = vmatprep.subr.mxu0 0.0
        %580 = vmatpush1.msra.mxu0 %v303
        %581 = vmatprep.subr.mxu0 0.0
        %582 = vmatpush1.msra.mxu0 %v302
        %583 = vmatprep.subr.mxu0 0.0
        %584 = vmatpush1.msra.mxu0 %v301
        %585 = vmatprep.subr.mxu0 0.0
        %586 = vmatpush1.msra.mxu0 %v300
        %587 = vmatprep.subr.mxu0 0.0
        %588 = vmatpush1.msra.mxu0 %v299
        %589 = vmatprep.subr.mxu0 0.0
        %590 = vmatpush1.msra.mxu0 %v298
        %591 = vmatprep.subr.mxu0 0.0
        %592 = vmatpush1.msra.mxu0 %v297
        %593 = vmatprep.subr.mxu0 0.0
        %594 = vmatpush1.msra.mxu0 %v296
        %595 = vmatprep.subr.mxu0 0.0
        %596 = vmatpush1.msra.mxu0 %v295
        %597 = vmatprep.subr.mxu0 0.0
        %598 = vmatpush1.msra.mxu0 %v294
        %599 = vmatprep.subr.mxu0 0.0
        %600 = vmatpush1.msra.mxu0 %v293
        %601 = vmatprep.subr.mxu0 0.0
        %602 = vmatpush1.msra.mxu0 %v292
        %603 = vmatprep.subr.mxu0 0.0
        %604 = vmatpush1.msra.mxu0 %v291
        %605 = vmatprep.subr.mxu0 0.0
        %606 = vmatpush1.msra.mxu0 %v290
        %607 = vmatprep.subr.mxu0 0.0
        %608 = vmatpush2.msra.mxu0 0.0
        %609 = vmatprep.subr.mxu0 0.0
        %610 = vmatpush2.msra.mxu0 0.0
        %611 = vmatprep.subr.mxu0 0.0
        %612 = vmatpush2.msra.mxu0 0.0
        %613 = vmatprep.subr.mxu0 0.0
        %614 = vmatpush2.msra.mxu0 0.0
        %615 = vmatprep.subr.mxu0 0.0
        %616 = vmatpush2.msra.mxu0 0.0
        %617 = vmatprep.subr.mxu0 0.0
        %618 = vmatpush2.msra.mxu0 0.0
        %619 = vmatprep.subr.mxu0 0.0
        %620 = vmatpush2.msra.mxu0 0.0
        %621 = vmatprep.subr.mxu0 0.0
        %622 = vmatpush2.msra.mxu0 0.0
        %623 = vmatprep.subr.mxu0 0.0
        %624 = vmatpush2.msra.mxu0 0.0
        %625 = vmatprep.subr.mxu0 0.0
        %626 = vmatpush2.msra.mxu0 %v312
        %627 = vmatprep.subr.mxu0 0.0
        %628 = vmatpush2.msra.mxu0 %v311
        %629 = vmatprep.subr.mxu0 0.0
        %630 = vmatpush2.msra.mxu0 %v310
        %631 = vmatprep.subr.mxu0 0.0
        %632 = vmatpush2.msra.mxu0 %v309
        %633 = vmatprep.subr.mxu0 0.0
        %634 = vmatpush2.msra.mxu0 %v308
        %635 = vmatprep.subr.mxu0 0.0
        %636 = vmatpush2.msra.mxu0 %v307
        %637 = vmatprep.subr.mxu0 0.0
        %638 = vmatpush2.msra.mxu0 %v306
        %639 = vmatprep.mubr.f32.mxu0 %v399
        %640 = vmatmul.mubr.f32.gmra.mxu0 %v204
        %v641 = vpop.f32.mrf.mxu0
        %v642 = vadd.f32 %v507, %v641
        %v643 = vpop.f32.mrf.mxu0
        %644 = vmatprep.mubr.f32.mxu0 %v402
        %645 = vmatmul.mubr.f32.gmra.mxu0 %v208
        %v646 = vpop.f32.mrf.mxu0
        %v647 = vadd.f32 %v512, %v646
        %v648 = vpop.f32.mrf.mxu0
        %649 = vmatprep.mubr.f32.mxu0 %v405
        %650 = vmatmul.mubr.f32.gmra.mxu0 %v212
        %v651 = vpop.f32.mrf.mxu0
        %v652 = vadd.f32 %v517, %v651
        %v653 = vpop.f32.mrf.mxu0
        %654 = vmatprep.mubr.f32.mxu0 %v408
        %655 = vmatmul.mubr.f32.gmra.mxu0 %v216
        %v656 = vpop.f32.mrf.mxu0
        %v657 = vadd.f32 %v522, %v656
        %v658 = vpop.f32.mrf.mxu0
        %659 = vmatprep.mubr.f32.mxu0 %v411
        %660 = vmatmul.mubr.f32.gmra.mxu0 %v220
        %v661 = vpop.f32.mrf.mxu0
        %v662 = vadd.f32 %v527, %v661
        %v663 = vpop.f32.mrf.mxu0
        %664 = vmatprep.mubr.f32.mxu0 %v414
        %665 = vmatmul.mubr.f32.gmra.mxu0 %v224
        %v666 = vpop.f32.mrf.mxu0
        %v667 = vadd.f32 %v532, %v666
        %v668 = vpop.f32.mrf.mxu0
        %669 = vmatprep.mubr.f32.mxu0 %v417
        %670 = vmatmul.mubr.f32.gmra.mxu0 %v228
        %v671 = vpop.f32.mrf.mxu0
        %v672 = vadd.f32 %v537, %v671
        %v673 = vpop.f32.mrf.mxu0
        %674 = vmatprep.mubr.f32.mxu0 %v420
        %675 = vmatmul.mubr.f32.gmra.mxu0 %v232
        %v676 = vpop.f32.mrf.mxu0
        %v677 = vadd.f32 %v542, %v676
        %v678 = vpop.f32.mrf.mxu0
        %679 = vmatprep.mubr.f32.mxu0 %v423
        %680 = vmatmul.mubr.f32.gmra.mxu0 %v236
        %v681 = vpop.f32.mrf.mxu0
        %v682 = vadd.f32 %v547, %v681
        %v683 = vpop.f32.mrf.mxu0
        %684 = vmatprep.mubr.f32.mxu0 %v426
        %685 = vmatmul.mubr.f32.gmra.mxu0 %v240
        %v686 = vpop.f32.mrf.mxu0
        %v687 = vadd.f32 %v552, %v686
        %v688 = vpop.f32.mrf.mxu0
        %689 = vmatprep.mubr.f32.mxu0 %v429
        %690 = vmatmul.mubr.f32.gmra.mxu0 %v244
        %v691 = vpop.f32.mrf.mxu0
        %v692 = vadd.f32 %v557, %v691
        %v693 = vpop.f32.mrf.mxu0
        %694 = vmatprep.mubr.f32.mxu0 %v432
        %695 = vmatmul.mubr.f32.gmra.mxu0 %v248
        %v696 = vpop.f32.mrf.mxu0
        %v697 = vadd.f32 %v562, %v696
        %v698 = vpop.f32.mrf.mxu0
        %699 = vmatprep.mubr.f32.mxu0 %v435
        %700 = vmatmul.mubr.f32.gmra.mxu0 %v252
        %v701 = vpop.f32.mrf.mxu0
        %v702 = vadd.f32 %v567, %v701
        %v703 = vpop.f32.mrf.mxu0
        %704 = vmatprep.mubr.f32.mxu0 %v438
        %705 = vmatmul.mubr.f32.gmra.mxu0 %v256
        %v706 = vpop.f32.mrf.mxu0
        %v707 = vadd.f32 %v572, %v706
        %v708 = vpop.f32.mrf.mxu0
        %709 = vdwg.mxu0
        %v710 = vmax.f32 %v642, 0.0
        %v711 = vmax.f32 %v647, 0.0
        %v712 = vmax.f32 %v652, 0.0
        %v713 = vmax.f32 %v657, 0.0
        %v714 = vmax.f32 %v662, 0.0
        %v715 = vmax.f32 %v667, 0.0
        %v716 = vmax.f32 %v672, 0.0
        %v717 = vmax.f32 %v677, 0.0
        %v718 = vmax.f32 %v682, 0.0
        %v719 = vmax.f32 %v687, 0.0
        %v720 = vmax.f32 %v692, 0.0
        %v721 = vmax.f32 %v697, 0.0
        %v722 = vmax.f32 %v702, 0.0
        %v723 = vmax.f32 %v707, 0.0
        %724 = vst [vmem:[%s201] sm:$0xff] %v710
        %725 = vst [vmem:[%s201 + $0x8] sm:$0xff] %v711
        %726 = vst [vmem:[%s201 + $0x10] sm:$0xff] %v712
        %727 = vst [vmem:[%s201 + $0x18] sm:$0xff] %v713
        %728 = vst [vmem:[%s201 + $0x20] sm:$0xff] %v714
        %729 = vst [vmem:[%s201 + $0x28] sm:$0xff] %v715
        %730 = vst [vmem:[%s201 + $0x30] sm:$0xff] %v716
        %731 = vst [vmem:[%s201 + $0x38] sm:$0xff] %v717
        %732 = vst [vmem:[%s201 + $0x40] sm:$0xff] %v718
        %733 = vst [vmem:[%s201 + $0x48] sm:$0xff] %v719
        %734 = vst [vmem:[%s201 + $0x50] sm:$0xff] %v720
        %735 = vst [vmem:[%s201 + $0x58] sm:$0xff] %v721
        %736 = vst [vmem:[%s201 + $0x60] sm:$0xff] %v722
        %737 = vst [vmem:[%s201 + $0x68] sm:$0x3f] %v723
        %s738 = sand.u32 %s109, 1
        %s739 = sand.u32 %s109, 1
        %s740 = smul.addr %s739, 112
        %s741 = scalar_lea.vmem [#allocation4], %s740
        // Predicated region
        $region37: #{tpu_custom_call.1} parent=31 // pred_check
          %p742 = pneg %p119
        $region38: #{tpu_custom_call.1} parent=31 // pred_check_branch
          %744 = sbr.rel (%p742) target = $region40
        $region39: #{tpu_custom_call.1} parent=31 // pred_region
          %s745 = smul.addr %s21, 28
          %s746 = sadd.s32 %s22, %s745
          %s747 = smul.addr %s746, 8
          %s748 = scalar_lea.vmem %s3, %s747
          // Predicated region
          $region41: #{tpu_custom_call.1} parent=39 // pred_check
            _
          $region42: #{tpu_custom_call.1} parent=39 // pred_check_branch
            %750 = sbr.rel (0) target = $region44
          $region43: #{tpu_custom_call.1} parent=39 // pred_region
            // Predicated region
            $region45: #{tpu_custom_call.1} parent=43 // pred_check
              _
            $region46: #{tpu_custom_call.1} parent=43 // pred_check_branch
              %752 = sbr.rel (0) target = $region48
            $region47: #{tpu_custom_call.1} parent=43 // pred_region
              // Predicated region
              $region60: #{tpu_custom_call.1} parent=47 // pred_check
                _
              $region61: #{tpu_custom_call.1} parent=47 // pred_check_branch
                %794 = sbr.rel (0) target = $region63
              $region62: #{tpu_custom_call.1} parent=47 // pred_region
                loop: start=0, step=1, limit=1
                $region64: #{tpu_custom_call.1} parent=62 // loop_pre_header
                  _
                $region65: #{tpu_custom_call.1} parent=62 // loop_header
                  %s796 = sphi 0, %s800
                  %p797 = scmp.ge.s32.totalorder %s796, 1
                  %s801 = sphi %s741, %s741
                  %s802 = sphi %s748, %s748
                $region66: #{tpu_custom_call.1} parent=62 // loop_header_branch
                  %799 = sbr.rel (%p797) target = $region70
                $region67: #{tpu_custom_call.1} parent=62 // loop_body
                  %v803 = vld [vmem:[%s801] sm:$0xff]
                  %804 = vst [vmem:[%s802] sm:$0xff] %v803
                  %v805 = vld [vmem:[%s801 + $0x8] sm:$0xff]
                  %806 = vst [vmem:[%s802 + $0x10] sm:$0xff] %v805
                  %v807 = vld [vmem:[%s801 + $0x10] sm:$0xff]
                  %808 = vst [vmem:[%s802 + $0x20] sm:$0xff] %v807
                  %v809 = vld [vmem:[%s801 + $0x18] sm:$0xff]
                  %810 = vst [vmem:[%s802 + $0x30] sm:$0xff] %v809
                  %v811 = vld [vmem:[%s801 + $0x20] sm:$0xff]
                  %812 = vst [vmem:[%s802 + $0x40] sm:$0xff] %v811
                  %v813 = vld [vmem:[%s801 + $0x28] sm:$0xff]
                  %814 = vst [vmem:[%s802 + $0x50] sm:$0xff] %v813
                  %v815 = vld [vmem:[%s801 + $0x30] sm:$0xff]
                  %816 = vst [vmem:[%s802 + $0x60] sm:$0xff] %v815
                  %v817 = vld [vmem:[%s801 + $0x38] sm:$0xff]
                  %818 = vst [vmem:[%s802 + $0x70] sm:$0xff] %v817
                  %v819 = vld [vmem:[%s801 + $0x40] sm:$0xff]
                  %820 = vst [vmem:[%s802 + $0x80] sm:$0xff] %v819
                  %v821 = vld [vmem:[%s801 + $0x48] sm:$0xff]
                  %822 = vst [vmem:[%s802 + $0x90] sm:$0xff] %v821
                  %v823 = vld [vmem:[%s801 + $0x50] sm:$0xff]
                  %824 = vst [vmem:[%s802 + $0xa0] sm:$0xff] %v823
                  %v825 = vld [vmem:[%s801 + $0x58] sm:$0xff]
                  %826 = vst [vmem:[%s802 + $0xb0] sm:$0xff] %v825
                  %v827 = vld [vmem:[%s801 + $0x60] sm:$0xff]
                  %828 = vst [vmem:[%s802 + $0xc0] sm:$0xff] %v827
                  %v829 = vld [vmem:[%s801 + $0x68] sm:$0xff]
                  %830 = vst [vmem:[%s802 + $0xd0] sm:$0xff] %v829
                $region68: #{tpu_custom_call.1} parent=62 // loop_footer
                  %s800 = sadd.s32 1, %s796
                $region69: #{tpu_custom_call.1} parent=62 // loop_footer_branch
                  %795 = sbr.rel target = $region65
                $region70: #{tpu_custom_call.1} parent=62 // loop_exit
                  _
              $region63: #{tpu_custom_call.1} parent=47 // pred_fallthru
                _
              // Predicated region
              $region71: #{tpu_custom_call.1} parent=47 // pred_check
                _
              $region72: #{tpu_custom_call.1} parent=47 // pred_check_branch
                %832 = sbr.rel target = $region74
              $region73: #{tpu_custom_call.1} parent=47 // pred_region
                _
              $region74: #{tpu_custom_call.1} parent=47 // pred_fallthru
                _
            $region48: #{tpu_custom_call.1} parent=43 // pred_fallthru
              _
            // Predicated region
            $region49: #{tpu_custom_call.1} parent=43 // pred_check
              _
            $region50: #{tpu_custom_call.1} parent=43 // pred_check_branch
              %754 = sbr.rel target = $region52
            $region51: #{tpu_custom_call.1} parent=43 // pred_region
              %s756 = ssub.s32 256, 1
              loop: start=0, step=1, limit=1
              $region53: #{tpu_custom_call.1} parent=51 // loop_pre_header
                _
              $region54: #{tpu_custom_call.1} parent=51 // loop_header
                %s758 = sphi 0, %s762
                %p759 = scmp.ge.s32.totalorder %s758, 1
                %s763 = sphi %s741, %s741
                %s764 = sphi %s748, %s748
              $region55: #{tpu_custom_call.1} parent=51 // loop_header_branch
                %761 = sbr.rel (%p759) target = $region59
              $region56: #{tpu_custom_call.1} parent=51 // loop_body
                %v765 = vld [vmem:[%s763] sm:%s756]
                %766 = vst [vmem:[%s764] sm:%s756] %v765
                %v767 = vld [vmem:[%s763 + $0x8] sm:%s756]
                %768 = vst [vmem:[%s764 + $0x10] sm:%s756] %v767
                %v769 = vld [vmem:[%s763 + $0x10] sm:%s756]
                %770 = vst [vmem:[%s764 + $0x20] sm:%s756] %v769
                %v771 = vld [vmem:[%s763 + $0x18] sm:%s756]
                %772 = vst [vmem:[%s764 + $0x30] sm:%s756] %v771
                %v773 = vld [vmem:[%s763 + $0x20] sm:%s756]
                %774 = vst [vmem:[%s764 + $0x40] sm:%s756] %v773
                %v775 = vld [vmem:[%s763 + $0x28] sm:%s756]
                %776 = vst [vmem:[%s764 + $0x50] sm:%s756] %v775
                %v777 = vld [vmem:[%s763 + $0x30] sm:%s756]
                %778 = vst [vmem:[%s764 + $0x60] sm:%s756] %v777
                %v779 = vld [vmem:[%s763 + $0x38] sm:%s756]
                %780 = vst [vmem:[%s764 + $0x70] sm:%s756] %v779
                %v781 = vld [vmem:[%s763 + $0x40] sm:%s756]
                %782 = vst [vmem:[%s764 + $0x80] sm:%s756] %v781
                %v783 = vld [vmem:[%s763 + $0x48] sm:%s756]
                %784 = vst [vmem:[%s764 + $0x90] sm:%s756] %v783
                %v785 = vld [vmem:[%s763 + $0x50] sm:%s756]
                %786 = vst [vmem:[%s764 + $0xa0] sm:%s756] %v785
                %v787 = vld [vmem:[%s763 + $0x58] sm:%s756]
                %788 = vst [vmem:[%s764 + $0xb0] sm:%s756] %v787
                %v789 = vld [vmem:[%s763 + $0x60] sm:%s756]
                %790 = vst [vmem:[%s764 + $0xc0] sm:%s756] %v789
                %v791 = vld [vmem:[%s763 + $0x68] sm:%s756]
                %792 = vst [vmem:[%s764 + $0xd0] sm:%s756] %v791
              $region57: #{tpu_custom_call.1} parent=51 // loop_footer
                %s762 = sadd.s32 1, %s758
              $region58: #{tpu_custom_call.1} parent=51 // loop_footer_branch
                %757 = sbr.rel target = $region54
              $region59: #{tpu_custom_call.1} parent=51 // loop_exit
                _
            $region52: #{tpu_custom_call.1} parent=43 // pred_fallthru
              _
          $region44: #{tpu_custom_call.1} parent=39 // pred_fallthru
            _
          %833 = vnop
        $region40: #{tpu_custom_call.1} parent=31 // pred_fallthru
          _
      $region32: #{tpu_custom_call.1} parent=5 // pred_fallthru
        _
      %p834 = scmp.le.s32.totalorder 2, %s12
      // Predicated region
      $region75: #{tpu_custom_call.1} parent=5 // pred_check
        %p835 = pneg %p834
      $region76: #{tpu_custom_call.1} parent=5 // pred_check_branch
        %837 = sbr.rel (%p835) target = $region78
      $region77: #{tpu_custom_call.1} parent=5 // pred_region
        %s838 = ssub.s32 %s12, 2
        // Predicated region
        $region79: #{tpu_custom_call.1} parent=77 // pred_check
          %p839 = pneg %p125
        $region80: #{tpu_custom_call.1} parent=77 // pred_check_branch
          %841 = sbr.rel (%p839) target = $region82
        $region81: #{tpu_custom_call.1} parent=77 // pred_region
          %s842 = sand.u32 %s110, 1
          %s843 = sand.u32 %s110, 1
          %s844 = smul.addr %s843, 112
          %s845 = scalar_lea.vmem [#allocation4], %s844
        $region82: #{tpu_custom_call.1} parent=77 // pred_fallthru
          _
      $region78: #{tpu_custom_call.1} parent=5 // pred_fallthru
        _
    $region6: #{tpu_custom_call.1} parent=1 // loop_footer
      %s16 = sadd.s32 1, %s12
    $region7: #{tpu_custom_call.1} parent=1 // loop_footer_branch
      %11 = sbr.rel target = $region3
    $region8: #{tpu_custom_call.1} parent=1 // loop_exit
      _
    %846 = vsyncpa [#allocation3], 1
    %s847 = scalar_lea.sflag [#allocation3], 1
    %848 = vsyncpa %s847, 1

</llo_original>
